<compile_context>
chip_gen: v7x
topology: tpu7x:2x2x1
jax: 0.10.0
libtpu: 0.0.40
codegen_flags: <defaults>
</compile_context>

<pallas_src>
import functools

import jax
import jax.numpy as jnp
from jax.experimental import pallas as pl
from jax.experimental.pallas import tpu as pltpu

_LANES = 128                  # vreg lane width -> lane-dense last dim
_SINGLE_BLOCK_MAX_ROWS = 8192 # 3 f32 arrays * 8192 * 128 * 4B = 12 MiB, under v5e's 16 MiB scoped VMEM
_MAX_TILE_ROWS = 4096         # large-tensor fallback tile (mem-bound adds hit ~86-90% of roofline here)


def _add_kernel(a_ref, b_ref, o_ref):
    # Single VPU elementwise add over the current lane-dense VMEM tile.
    o_ref[...] = a_ref[...] + b_ref[...]


def _residual_add(x95: jax.Array, x89: jax.Array) -> jax.Array:
    assert x95.shape == x89.shape and x95.dtype == x89.dtype
    orig_shape = x95.shape
    total = x95.size
    dtype = x95.dtype
    bytes_per_elem = jnp.dtype(dtype).itemsize

    # Lane-dense flattening: view the contiguous NCHW buffer as (rows, 128).
    # For (1, 96, 28, 28): 75264 elements = 588 * 128, no padding needed.
    pad = (-total) % _LANES
    a_flat = x95.reshape(-1)
    b_flat = x89.reshape(-1)
    if pad:  # general-shape fallback (not hit for this module's shape)
        a_flat = jnp.pad(a_flat, (0, pad))
        b_flat = jnp.pad(b_flat, (0, pad))
    rows = (total + pad) // _LANES
    a2 = a_flat.reshape(rows, _LANES)
    b2 = b_flat.reshape(rows, _LANES)

    cost = pl.CostEstimate(
        flops=total,
        transcendentals=0,
        bytes_accessed=3 * total * bytes_per_elem,
    )

    if rows <= _SINGLE_BLOCK_MAX_ROWS:
        # Whole problem in one VMEM-resident block: no grid, no pipelining,
        # no partial/masked tail tile.  This is the path taken for (1,96,28,28).
        out2 = pl.pallas_call(
            _add_kernel,
            out_shape=jax.ShapeDtypeStruct((rows, _LANES), dtype),
            in_specs=[
                pl.BlockSpec(memory_space=pltpu.MemorySpace.VMEM),
                pl.BlockSpec(memory_space=pltpu.MemorySpace.VMEM),
            ],
            out_specs=pl.BlockSpec(memory_space=pltpu.MemorySpace.VMEM),
            cost_estimate=cost,
        )(a2, b2)
    else:
        # Large-tensor path: balanced tiles, rounded up to a multiple of 8
        # sublanes so the last tile is never tiny/imbalanced.
        n_tiles = pl.cdiv(rows, _MAX_TILE_ROWS)
        tile_rows = ((pl.cdiv(rows, n_tiles) + 7) // 8) * 8
        grid = (pl.cdiv(rows, tile_rows),)
        out2 = pl.pallas_call(
            _add_kernel,
            out_shape=jax.ShapeDtypeStruct((rows, _LANES), dtype),
            grid=grid,
            in_specs=[
                pl.BlockSpec((tile_rows, _LANES), lambda i: (i, 0)),
                pl.BlockSpec((tile_rows, _LANES), lambda i: (i, 0)),
            ],
            out_specs=pl.BlockSpec((tile_rows, _LANES), lambda i: (i, 0)),
            compiler_params=pltpu.CompilerParams(
                dimension_semantics=("parallel",),
            ),
            cost_estimate=cost,
        )(a2, b2)

    out_flat = out2.reshape(-1)
    if pad:
        out_flat = out_flat[:total]
    return out_flat.reshape(orig_shape)


# jit so the reshape plumbing around pallas_call is layout-only (no extra HBM passes).
residual_add = jax.jit(_residual_add)


if __name__ == "__main__":
    key = jax.random.PRNGKey(0)
    k1, k2 = jax.random.split(key)
    # Shapes implied by the module's forward: (1, 96, 28, 28), NCHW, float32.
    x95 = jax.random.normal(k1, (1, 96, 28, 28), dtype=jnp.float32)
    x89 = jax.random.normal(k2, (1, 96, 28, 28), dtype=jnp.float32)

    out = residual_add(x95, x89)
    jax.block_until_ready(out)

    # Correctness check against plain JAX reference.
    ref = x95 + x89
    assert out.shape == ref.shape and out.dtype == ref.dtype
    assert jnp.allclose(out, ref, atol=1e-6, rtol=1e-6)

    print("KERNEL_OK")
</pallas_src>

<mosaic_0001>
module attributes {stable_mosaic.version = 11 : i64} {
  func.func @_add_kernel(%arg0: memref<588x128xf32, #tpu.memory_space<vmem>>, %arg1: memref<588x128xf32, #tpu.memory_space<vmem>>, %arg2: memref<588x128xf32, #tpu.memory_space<vmem>>) attributes {dimension_semantics = [], scalar_prefetch = 0 : i64, scratch_operands = 0 : i64, tpu.core_type = #tpu.core_type<tc>} {
    %c0 = arith.constant 0 : index
    %c0_0 = arith.constant 0 : index
    %0 = vector.load %arg0[%c0, %c0_0] : memref<588x128xf32, #tpu.memory_space<vmem>>, vector<588x128xf32>
    %c0_1 = arith.constant 0 : index
    %c0_2 = arith.constant 0 : index
    %1 = vector.load %arg1[%c0_1, %c0_2] : memref<588x128xf32, #tpu.memory_space<vmem>>, vector<588x128xf32>
    %2 = arith.addf %0, %1 : vector<588x128xf32>
    %c0_3 = arith.constant 0 : index
    %c0_4 = arith.constant 0 : index
    %3 = vector.load %arg2[%c0_3, %c0_4] : memref<588x128xf32, #tpu.memory_space<vmem>>, vector<588x128xf32>
    tpu.vector_store %arg2[%c0_3, %c0_4], %2 {strides = array<i32>} : memref<588x128xf32, #tpu.memory_space<vmem>>, vector<588x128xf32>,
    return
  }
}

</mosaic_0001>

<llo_original>
// kernel: _residual_add.1
$region0: #{_residual_add.1}
  #allocation0 [shape = 'u32[]', space=smem, size = 0x4, offset = 0x4, fixed_abs, tag = 'smem constant byte address 0x4 - core index']
  #allocation1 [shape = 'u32[144,128]{1,0:T(1,128)}', space=vmem, size = 0x12000, scoped, tag = 'internal scratch']
  %s0 = inlined_call_operand.vmem [shape: f32[588,128], index: 0, kind: input, shape index: {}]
  %s1 = inlined_call_operand.vmem [shape: f32[588,128], index: 1, kind: input, shape index: {}]
  %s2 = inlined_call_operand.vmem [shape: f32[588,128], index: 2, kind: output, shape index: {}]
  %s3 = sld [smem:[#allocation0]]
  $region18: #{_residual_add.1} parent=0
    _
  %s5 = ssub.s32 1, %s3
  %s6 = scalar_select 0, %s5, %s3
  // Predicated region
  $region2: #{_residual_add.1} parent=0 // pred_check
    _
  $region3: #{_residual_add.1} parent=0 // pred_check_branch
    %8 = sbr.rel (0) target = $region5
  $region4: #{_residual_add.1} parent=0 // pred_region
    _
  $region5: #{_residual_add.1} parent=0 // pred_fallthru
    _
  // Predicated region
  $region6: #{_residual_add.1} parent=0 // pred_check
    _
  $region7: #{_residual_add.1} parent=0 // pred_check_branch
    %10 = sbr.rel (0) target = $region9
  $region8: #{_residual_add.1} parent=0 // pred_region
    _
  $region9: #{_residual_add.1} parent=0 // pred_fallthru
    _
  %v11 = vld [vmem:[%s0] sm:$0xff]
  %v12 = vld [vmem:[%s0 + $0x8] sm:$0xff]
  %v13 = vld [vmem:[%s0 + $0x10] sm:$0xff]
  %v14 = vld [vmem:[%s0 + $0x18] sm:$0xff]
  %v15 = vld [vmem:[%s0 + $0x20] sm:$0xff]
  %v16 = vld [vmem:[%s0 + $0x28] sm:$0xff]
  %v17 = vld [vmem:[%s0 + $0x30] sm:$0xff]
  %v18 = vld [vmem:[%s0 + $0x38] sm:$0xff]
  %v19 = vld [vmem:[%s0 + $0x40] sm:$0xff]
  %v20 = vld [vmem:[%s0 + $0x48] sm:$0xff]
  %v21 = vld [vmem:[%s0 + $0x50] sm:$0xff]
  %v22 = vld [vmem:[%s0 + $0x58] sm:$0xff]
  %v23 = vld [vmem:[%s0 + $0x60] sm:$0xff]
  %v24 = vld [vmem:[%s0 + $0x68] sm:$0xff]
  %v25 = vld [vmem:[%s0 + $0x70] sm:$0xff]
  %v26 = vld [vmem:[%s0 + $0x78] sm:$0xff]
  %v27 = vld [vmem:[%s0 + $0x80] sm:$0xff]
  %v28 = vld [vmem:[%s0 + $0x88] sm:$0xff]
  %v29 = vld [vmem:[%s0 + $0x90] sm:$0xff]
  %v30 = vld [vmem:[%s0 + $0x98] sm:$0xff]
  %v31 = vld [vmem:[%s0 + $0xa0] sm:$0xff]
  %v32 = vld [vmem:[%s0 + $0xa8] sm:$0xff]
  %v33 = vld [vmem:[%s0 + $0xb0] sm:$0xff]
  %v34 = vld [vmem:[%s0 + $0xb8] sm:$0xff]
  %v35 = vld [vmem:[%s0 + $0xc0] sm:$0xff]
  %v36 = vld [vmem:[%s0 + $0xc8] sm:$0xff]
  %v37 = vld [vmem:[%s0 + $0xd0] sm:$0xff]
  %v38 = vld [vmem:[%s0 + $0xd8] sm:$0xff]
  %v39 = vld [vmem:[%s0 + $0xe0] sm:$0xff]
  %v40 = vld [vmem:[%s0 + $0xe8] sm:$0xff]
  %v41 = vld [vmem:[%s0 + $0xf0] sm:$0xff]
  %v42 = vld [vmem:[%s0 + $0xf8] sm:$0xff]
  %v43 = vld [vmem:[%s0 + $0x100] sm:$0xff]
  %v44 = vld [vmem:[%s0 + $0x108] sm:$0xff]
  %v45 = vld [vmem:[%s0 + $0x110] sm:$0xff]
  %v46 = vld [vmem:[%s0 + $0x118] sm:$0xff]
  %v47 = vld [vmem:[%s0 + $0x120] sm:$0xff]
  %v48 = vld [vmem:[%s0 + $0x128] sm:$0xff]
  %v49 = vld [vmem:[%s0 + $0x130] sm:$0xff]
  %v50 = vld [vmem:[%s0 + $0x138] sm:$0xff]
  %v51 = vld [vmem:[%s0 + $0x140] sm:$0xff]
  %v52 = vld [vmem:[%s0 + $0x148] sm:$0xff]
  %v53 = vld [vmem:[%s0 + $0x150] sm:$0xff]
  %v54 = vld [vmem:[%s0 + $0x158] sm:$0xff]
  %v55 = vld [vmem:[%s0 + $0x160] sm:$0xff]
  %v56 = vld [vmem:[%s0 + $0x168] sm:$0xff]
  %v57 = vld [vmem:[%s0 + $0x170] sm:$0xff]
  %v58 = vld [vmem:[%s0 + $0x178] sm:$0xff]
  %v59 = vld [vmem:[%s0 + $0x180] sm:$0xff]
  %v60 = vld [vmem:[%s0 + $0x188] sm:$0xff]
  %v61 = vld [vmem:[%s0 + $0x190] sm:$0xff]
  %v62 = vld [vmem:[%s0 + $0x198] sm:$0xff]
  %v63 = vld [vmem:[%s0 + $0x1a0] sm:$0xff]
  %v64 = vld [vmem:[%s0 + $0x1a8] sm:$0xff]
  %v65 = vld [vmem:[%s0 + $0x1b0] sm:$0xff]
  %v66 = vld [vmem:[%s0 + $0x1b8] sm:$0xff]
  %v67 = vld [vmem:[%s0 + $0x1c0] sm:$0xff]
  %v68 = vld [vmem:[%s0 + $0x1c8] sm:$0xff]
  %v69 = vld [vmem:[%s0 + $0x1d0] sm:$0xff]
  %v70 = vld [vmem:[%s0 + $0x1d8] sm:$0xff]
  %v71 = vld [vmem:[%s0 + $0x1e0] sm:$0xff]
  %v72 = vld [vmem:[%s0 + $0x1e8] sm:$0xff]
  %v73 = vld [vmem:[%s0 + $0x1f0] sm:$0xff]
  %v74 = vld [vmem:[%s0 + $0x1f8] sm:$0xff]
  %v75 = vld [vmem:[%s0 + $0x200] sm:$0xff]
  %v76 = vld [vmem:[%s0 + $0x208] sm:$0xff]
  %v77 = vld [vmem:[%s0 + $0x210] sm:$0xff]
  %v78 = vld [vmem:[%s0 + $0x218] sm:$0xff]
  %v79 = vld [vmem:[%s0 + $0x220] sm:$0xff]
  %v80 = vld [vmem:[%s0 + $0x228] sm:$0xff]
  %v81 = vld [vmem:[%s0 + $0x230] sm:$0xff]
  %v82 = vld [vmem:[%s0 + $0x238] sm:$0xff]
  %v83 = vld [vmem:[%s0 + $0x240] sm:$0xff]
  %v84 = vld [vmem:[%s0 + $0x248] sm:$0xf]
  %v85 = vld [vmem:[%s1] sm:$0xff]
  %v86 = vld [vmem:[%s1 + $0x8] sm:$0xff]
  %v87 = vld [vmem:[%s1 + $0x10] sm:$0xff]
  %v88 = vld [vmem:[%s1 + $0x18] sm:$0xff]
  %v89 = vld [vmem:[%s1 + $0x20] sm:$0xff]
  %v90 = vld [vmem:[%s1 + $0x28] sm:$0xff]
  %v91 = vld [vmem:[%s1 + $0x30] sm:$0xff]
  %v92 = vld [vmem:[%s1 + $0x38] sm:$0xff]
  %v93 = vld [vmem:[%s1 + $0x40] sm:$0xff]
  %v94 = vld [vmem:[%s1 + $0x48] sm:$0xff]
  %v95 = vld [vmem:[%s1 + $0x50] sm:$0xff]
  %v96 = vld [vmem:[%s1 + $0x58] sm:$0xff]
  %v97 = vld [vmem:[%s1 + $0x60] sm:$0xff]
  %v98 = vld [vmem:[%s1 + $0x68] sm:$0xff]
  %v99 = vld [vmem:[%s1 + $0x70] sm:$0xff]
  %v100 = vld [vmem:[%s1 + $0x78] sm:$0xff]
  %v101 = vld [vmem:[%s1 + $0x80] sm:$0xff]
  %v102 = vld [vmem:[%s1 + $0x88] sm:$0xff]
  %v103 = vld [vmem:[%s1 + $0x90] sm:$0xff]
  %v104 = vld [vmem:[%s1 + $0x98] sm:$0xff]
  %v105 = vld [vmem:[%s1 + $0xa0] sm:$0xff]
  %v106 = vld [vmem:[%s1 + $0xa8] sm:$0xff]
  %v107 = vld [vmem:[%s1 + $0xb0] sm:$0xff]
  %v108 = vld [vmem:[%s1 + $0xb8] sm:$0xff]
  %v109 = vld [vmem:[%s1 + $0xc0] sm:$0xff]
  %v110 = vld [vmem:[%s1 + $0xc8] sm:$0xff]
  %v111 = vld [vmem:[%s1 + $0xd0] sm:$0xff]
  %v112 = vld [vmem:[%s1 + $0xd8] sm:$0xff]
  %v113 = vld [vmem:[%s1 + $0xe0] sm:$0xff]
  %v114 = vld [vmem:[%s1 + $0xe8] sm:$0xff]
  %v115 = vld [vmem:[%s1 + $0xf0] sm:$0xff]
  %v116 = vld [vmem:[%s1 + $0xf8] sm:$0xff]
  %v117 = vld [vmem:[%s1 + $0x100] sm:$0xff]
  %v118 = vld [vmem:[%s1 + $0x108] sm:$0xff]
  %v119 = vld [vmem:[%s1 + $0x110] sm:$0xff]
  %v120 = vld [vmem:[%s1 + $0x118] sm:$0xff]
  %v121 = vld [vmem:[%s1 + $0x120] sm:$0xff]
  %v122 = vld [vmem:[%s1 + $0x128] sm:$0xff]
  %v123 = vld [vmem:[%s1 + $0x130] sm:$0xff]
  %v124 = vld [vmem:[%s1 + $0x138] sm:$0xff]
  %v125 = vld [vmem:[%s1 + $0x140] sm:$0xff]
  %v126 = vld [vmem:[%s1 + $0x148] sm:$0xff]
  %v127 = vld [vmem:[%s1 + $0x150] sm:$0xff]
  %v128 = vld [vmem:[%s1 + $0x158] sm:$0xff]
  %v129 = vld [vmem:[%s1 + $0x160] sm:$0xff]
  %v130 = vld [vmem:[%s1 + $0x168] sm:$0xff]
  %v131 = vld [vmem:[%s1 + $0x170] sm:$0xff]
  %v132 = vld [vmem:[%s1 + $0x178] sm:$0xff]
  %v133 = vld [vmem:[%s1 + $0x180] sm:$0xff]
  %v134 = vld [vmem:[%s1 + $0x188] sm:$0xff]
  %v135 = vld [vmem:[%s1 + $0x190] sm:$0xff]
  %v136 = vld [vmem:[%s1 + $0x198] sm:$0xff]
  %v137 = vld [vmem:[%s1 + $0x1a0] sm:$0xff]
  %v138 = vld [vmem:[%s1 + $0x1a8] sm:$0xff]
  %v139 = vld [vmem:[%s1 + $0x1b0] sm:$0xff]
  %v140 = vld [vmem:[%s1 + $0x1b8] sm:$0xff]
  %v141 = vld [vmem:[%s1 + $0x1c0] sm:$0xff]
  %v142 = vld [vmem:[%s1 + $0x1c8] sm:$0xff]
  %v143 = vld [vmem:[%s1 + $0x1d0] sm:$0xff]
  %v144 = vld [vmem:[%s1 + $0x1d8] sm:$0xff]
  %v145 = vld [vmem:[%s1 + $0x1e0] sm:$0xff]
  %v146 = vld [vmem:[%s1 + $0x1e8] sm:$0xff]
  %v147 = vld [vmem:[%s1 + $0x1f0] sm:$0xff]
  %v148 = vld [vmem:[%s1 + $0x1f8] sm:$0xff]
  %v149 = vld [vmem:[%s1 + $0x200] sm:$0xff]
  %v150 = vld [vmem:[%s1 + $0x208] sm:$0xff]
  %v151 = vld [vmem:[%s1 + $0x210] sm:$0xff]
  %v152 = vld [vmem:[%s1 + $0x218] sm:$0xff]
  %v153 = vld [vmem:[%s1 + $0x220] sm:$0xff]
  %v154 = vld [vmem:[%s1 + $0x228] sm:$0xff]
  %v155 = vld [vmem:[%s1 + $0x230] sm:$0xff]
  %v156 = vld [vmem:[%s1 + $0x238] sm:$0xff]
  %v157 = vld [vmem:[%s1 + $0x240] sm:$0xff]
  %v158 = vld [vmem:[%s1 + $0x248] sm:$0xf]
  %v159 = vadd.f32 %v11, %v85
  %v160 = vadd.f32 %v12, %v86
  %v161 = vadd.f32 %v13, %v87
  %v162 = vadd.f32 %v14, %v88
  %v163 = vadd.f32 %v15, %v89
  %v164 = vadd.f32 %v16, %v90
  %v165 = vadd.f32 %v17, %v91
  %v166 = vadd.f32 %v18, %v92
  %v167 = vadd.f32 %v19, %v93
  %v168 = vadd.f32 %v20, %v94
  %v169 = vadd.f32 %v21, %v95
  %v170 = vadd.f32 %v22, %v96
  %v171 = vadd.f32 %v23, %v97
  %v172 = vadd.f32 %v24, %v98
  %v173 = vadd.f32 %v25, %v99
  %v174 = vadd.f32 %v26, %v100
  %v175 = vadd.f32 %v27, %v101
  %v176 = vadd.f32 %v28, %v102
  %v177 = vadd.f32 %v29, %v103
  %v178 = vadd.f32 %v30, %v104
  %v179 = vadd.f32 %v31, %v105
  %v180 = vadd.f32 %v32, %v106
  %v181 = vadd.f32 %v33, %v107
  %v182 = vadd.f32 %v34, %v108
  %v183 = vadd.f32 %v35, %v109
  %v184 = vadd.f32 %v36, %v110
  %v185 = vadd.f32 %v37, %v111
  %v186 = vadd.f32 %v38, %v112
  %v187 = vadd.f32 %v39, %v113
  %v188 = vadd.f32 %v40, %v114
  %v189 = vadd.f32 %v41, %v115
  %v190 = vadd.f32 %v42, %v116
  %v191 = vadd.f32 %v43, %v117
  %v192 = vadd.f32 %v44, %v118
  %v193 = vadd.f32 %v45, %v119
  %v194 = vadd.f32 %v46, %v120
  %v195 = vadd.f32 %v47, %v121
  %v196 = vadd.f32 %v48, %v122
  %v197 = vadd.f32 %v49, %v123
  %v198 = vadd.f32 %v50, %v124
  %v199 = vadd.f32 %v51, %v125
  %v200 = vadd.f32 %v52, %v126
  %v201 = vadd.f32 %v53, %v127
  %v202 = vadd.f32 %v54, %v128
  %v203 = vadd.f32 %v55, %v129
  %v204 = vadd.f32 %v56, %v130
  %v205 = vadd.f32 %v57, %v131
  %v206 = vadd.f32 %v58, %v132
  %v207 = vadd.f32 %v59, %v133
  %v208 = vadd.f32 %v60, %v134
  %v209 = vadd.f32 %v61, %v135
  %v210 = vadd.f32 %v62, %v136
  %v211 = vadd.f32 %v63, %v137
  %v212 = vadd.f32 %v64, %v138
  %v213 = vadd.f32 %v65, %v139
  %v214 = vadd.f32 %v66, %v140
  %v215 = vadd.f32 %v67, %v141
  %v216 = vadd.f32 %v68, %v142
  %v217 = vadd.f32 %v69, %v143
  %v218 = vadd.f32 %v70, %v144
  %v219 = vadd.f32 %v71, %v145
  %v220 = vadd.f32 %v72, %v146
  %v221 = vadd.f32 %v73, %v147
  %v222 = vadd.f32 %v74, %v148
  %v223 = vadd.f32 %v75, %v149
  %v224 = vadd.f32 %v76, %v150
  %v225 = vadd.f32 %v77, %v151
  %v226 = vadd.f32 %v78, %v152
  %v227 = vadd.f32 %v79, %v153
  %v228 = vadd.f32 %v80, %v154
  %v229 = vadd.f32 %v81, %v155
  %v230 = vadd.f32 %v82, %v156
  %v231 = vadd.f32 %v83, %v157
  %v232 = vadd.f32 %v84, %v158
  %233 = vst [vmem:[%s2] sm:$0xff] %v159
  %234 = vst [vmem:[%s2 + $0x8] sm:$0xff] %v160
  %235 = vst [vmem:[%s2 + $0x10] sm:$0xff] %v161
  %236 = vst [vmem:[%s2 + $0x18] sm:$0xff] %v162
  %237 = vst [vmem:[%s2 + $0x20] sm:$0xff] %v163
  %238 = vst [vmem:[%s2 + $0x28] sm:$0xff] %v164
  %239 = vst [vmem:[%s2 + $0x30] sm:$0xff] %v165
  %240 = vst [vmem:[%s2 + $0x38] sm:$0xff] %v166
  %241 = vst [vmem:[%s2 + $0x40] sm:$0xff] %v167
  %242 = vst [vmem:[%s2 + $0x48] sm:$0xff] %v168
  %243 = vst [vmem:[%s2 + $0x50] sm:$0xff] %v169
  %244 = vst [vmem:[%s2 + $0x58] sm:$0xff] %v170
  %245 = vst [vmem:[%s2 + $0x60] sm:$0xff] %v171
  %246 = vst [vmem:[%s2 + $0x68] sm:$0xff] %v172
  %247 = vst [vmem:[%s2 + $0x70] sm:$0xff] %v173
  %248 = vst [vmem:[%s2 + $0x78] sm:$0xff] %v174
  %249 = vst [vmem:[%s2 + $0x80] sm:$0xff] %v175
  %250 = vst [vmem:[%s2 + $0x88] sm:$0xff] %v176
  %251 = vst [vmem:[%s2 + $0x90] sm:$0xff] %v177
  %252 = vst [vmem:[%s2 + $0x98] sm:$0xff] %v178
  %253 = vst [vmem:[%s2 + $0xa0] sm:$0xff] %v179
  %254 = vst [vmem:[%s2 + $0xa8] sm:$0xff] %v180
  %255 = vst [vmem:[%s2 + $0xb0] sm:$0xff] %v181
  %256 = vst [vmem:[%s2 + $0xb8] sm:$0xff] %v182
  %257 = vst [vmem:[%s2 + $0xc0] sm:$0xff] %v183
  %258 = vst [vmem:[%s2 + $0xc8] sm:$0xff] %v184
  %259 = vst [vmem:[%s2 + $0xd0] sm:$0xff] %v185
  %260 = vst [vmem:[%s2 + $0xd8] sm:$0xff] %v186
  %261 = vst [vmem:[%s2 + $0xe0] sm:$0xff] %v187
  %262 = vst [vmem:[%s2 + $0xe8] sm:$0xff] %v188
  %263 = vst [vmem:[%s2 + $0xf0] sm:$0xff] %v189
  %264 = vst [vmem:[%s2 + $0xf8] sm:$0xff] %v190
  %265 = vst [vmem:[%s2 + $0x100] sm:$0xff] %v191
  %266 = vst [vmem:[%s2 + $0x108] sm:$0xff] %v192
  %267 = vst [vmem:[%s2 + $0x110] sm:$0xff] %v193
  %268 = vst [vmem:[%s2 + $0x118] sm:$0xff] %v194
  %269 = vst [vmem:[%s2 + $0x120] sm:$0xff] %v195
  %270 = vst [vmem:[%s2 + $0x128] sm:$0xff] %v196
  %271 = vst [vmem:[%s2 + $0x130] sm:$0xff] %v197
  %272 = vst [vmem:[%s2 + $0x138] sm:$0xff] %v198
  %273 = vst [vmem:[%s2 + $0x140] sm:$0xff] %v199
  %274 = vst [vmem:[%s2 + $0x148] sm:$0xff] %v200
  %275 = vst [vmem:[%s2 + $0x150] sm:$0xff] %v201
  %276 = vst [vmem:[%s2 + $0x158] sm:$0xff] %v202
  %277 = vst [vmem:[%s2 + $0x160] sm:$0xff] %v203
  %278 = vst [vmem:[%s2 + $0x168] sm:$0xff] %v204
  %279 = vst [vmem:[%s2 + $0x170] sm:$0xff] %v205
  %280 = vst [vmem:[%s2 + $0x178] sm:$0xff] %v206
  %281 = vst [vmem:[%s2 + $0x180] sm:$0xff] %v207
  %282 = vst [vmem:[%s2 + $0x188] sm:$0xff] %v208
  %283 = vst [vmem:[%s2 + $0x190] sm:$0xff] %v209
  %284 = vst [vmem:[%s2 + $0x198] sm:$0xff] %v210
  %285 = vst [vmem:[%s2 + $0x1a0] sm:$0xff] %v211
  %286 = vst [vmem:[%s2 + $0x1a8] sm:$0xff] %v212
  %287 = vst [vmem:[%s2 + $0x1b0] sm:$0xff] %v213
  %288 = vst [vmem:[%s2 + $0x1b8] sm:$0xff] %v214
  %289 = vst [vmem:[%s2 + $0x1c0] sm:$0xff] %v215
  %290 = vst [vmem:[%s2 + $0x1c8] sm:$0xff] %v216
  %291 = vst [vmem:[%s2 + $0x1d0] sm:$0xff] %v217
  %292 = vst [vmem:[%s2 + $0x1d8] sm:$0xff] %v218
  %293 = vst [vmem:[%s2 + $0x1e0] sm:$0xff] %v219
  %294 = vst [vmem:[%s2 + $0x1e8] sm:$0xff] %v220
  %295 = vst [vmem:[%s2 + $0x1f0] sm:$0xff] %v221
  %296 = vst [vmem:[%s2 + $0x1f8] sm:$0xff] %v222
  %297 = vst [vmem:[%s2 + $0x200] sm:$0xff] %v223
  %298 = vst [vmem:[%s2 + $0x208] sm:$0xff] %v224
  %299 = vst [vmem:[%s2 + $0x210] sm:$0xff] %v225
  %300 = vst [vmem:[%s2 + $0x218] sm:$0xff] %v226
  %301 = vst [vmem:[%s2 + $0x220] sm:$0xff] %v227
  %302 = vst [vmem:[%s2 + $0x228] sm:$0xff] %v228
  %303 = vst [vmem:[%s2 + $0x230] sm:$0xff] %v229
  %304 = vst [vmem:[%s2 + $0x238] sm:$0xff] %v230
  %305 = vst [vmem:[%s2 + $0x240] sm:$0xff] %v231
  %306 = vst [vmem:[%s2 + $0x248] sm:$0xf] %v232
  // Predicated region
  $region10: #{_residual_add.1} parent=0 // pred_check
    _
  $region11: #{_residual_add.1} parent=0 // pred_check_branch
    %308 = sbr.rel (0) target = $region13
  $region12: #{_residual_add.1} parent=0 // pred_region
    _
  $region13: #{_residual_add.1} parent=0 // pred_fallthru
    _
  // Predicated region
  $region14: #{_residual_add.1} parent=0 // pred_check
    _
  $region15: #{_residual_add.1} parent=0 // pred_check_branch
    %310 = sbr.rel (0) target = $region17
  $region16: #{_residual_add.1} parent=0 // pred_region
    _
  $region17: #{_residual_add.1} parent=0 // pred_fallthru
    _

</llo_original>
